<compile_context>
chip_gen: v7x
topology: tpu7x:2x2x1
jax: 0.10.0
libtpu: 0.0.40
codegen_flags: <defaults>
</compile_context>

<pallas_src>
from functools import partial

import jax
import jax.numpy as jnp
from jax.experimental import pallas as pl
from jax.experimental.pallas import tpu as pltpu


def _band_matmul_kernel(x_ref, w_ref, b_ref, o_ref, *, negative_slope):
    """One grid step = one row tile.

    x_ref: (TM, KH*W*Cin)      bf16 im2col'ed input rows (lane-dense)
    w_ref: (KH*W*Cin, W*Cout)  bf16 banded weight (kw taps + W zero-pad folded in)
    b_ref: (1, W*Cout)         f32 bias tiled over W
    o_ref: (TM, W*Cout)        output tile (lane-dense)
    """
    y = jnp.dot(x_ref[...], w_ref[...], preferred_element_type=jnp.float32)
    y = y + b_ref[...]                              # f32 bias add
    y = jnp.where(y >= 0, y, negative_slope * y)    # LeakyReLU(0.2) in f32
    o_ref[...] = y.astype(o_ref.dtype)              # single cast at the store


def _build_banded_weight(w_hwio, width):
    """(KH, KW, Cin, Cout) HWIO -> (KH*W*Cin, W*Cout) banded matrix.

    band[kh*W*Cin + wi*Cin + ci, wo*Cout + co] = w[kh, wi-wo+r, ci, co] if
    |wi - wo| <= r (r = KW//2) else 0: the KW taps and the zero padding along W are
    folded into the matrix so the kernel is a single matmul.
    """
    kh, kw, cin, cout = w_hwio.shape
    r = kw // 2
    wi = jnp.arange(width)[:, None]
    wo = jnp.arange(width)[None, :]
    d = wi - wo + r
    valid = (d >= 0) & (d < kw)
    dc = jnp.clip(d, 0, kw - 1)
    wb = jnp.where(valid[None, :, :, None, None], w_hwio[:, dc], 0.0)
    wb = wb.transpose(0, 1, 3, 2, 4).reshape(kh, width * cin, width * cout)
    return wb.reshape(kh * width * cin, width * cout)


def _pick_row_tile(rows, max_tile=128):
    """Largest multiple-of-8 divisor of `rows` (<= max_tile); once there is enough
    work (rows > 64) prefer >= 2 grid steps so both v7x TensorCores stay busy."""
    best = rows  # full extent is always a legal block shape
    for t in range(8, min(rows, max_tile) + 1, 8):
        if rows % t == 0 and (rows // t >= 2 or rows <= 64):
            best = t
    return best


def _vmem_limit_bytes():
    cap = 128 * 1024 * 1024
    try:  # generation-aware: v5e/v6e have 128 MiB VMEM per core, v7x only 64 MiB
        info = pltpu.get_tpu_info()
        cap = int(getattr(info, "vmem_capacity_bytes", cap)) or cap
    except Exception:
        pass
    return min(max(cap // 2, 16 * 1024 * 1024), 96 * 1024 * 1024)


def _conv_leaky_impl(x_nhwc, w_hwio, bias, negative_slope, out_dtype, compute_dtype,
                     max_row_tile):
    n, h, wdt, cin = x_nhwc.shape
    kh, kw, _, cout = w_hwio.shape
    r = kh // 2

    if wdt * cin > 256:
        # TODO(synk): W-tiled / block-banded path for large widths; the dense band
        # grows as O(W^2) in VMEM and inflates MXU FLOPs by W/KW.
        raise NotImplementedError("banded conv path requires W*Cin <= 256")

    # im2col the KH taps onto the lane axis in the wrapper: the kernel then runs one
    # K = KH*W*Cin matmul per tile and never slices at shifted sublane offsets.
    x_flat = x_nhwc.reshape(n, h, wdt * cin)
    if r > 0:
        x_pad = jnp.pad(x_flat, ((0, 0), (r, r), (0, 0)))  # halo only along H
        x_flat = jnp.concatenate([x_pad[:, k:k + h, :] for k in range(kh)], axis=-1)

    rows = n * h                       # batch folded onto the sublane (M) axis
    k_dim = kh * wdt * cin
    n_dim = wdt * cout
    x_rows = x_flat.reshape(rows, k_dim).astype(compute_dtype)

    wb = _build_banded_weight(w_hwio.astype(jnp.float32), wdt).astype(compute_dtype)
    b_row = jnp.tile(bias.astype(jnp.float32), wdt).reshape(1, n_dim)

    tm = _pick_row_tile(rows, max_row_tile)
    grid_m = rows // tm

    out_rows = pl.pallas_call(
        partial(_band_matmul_kernel, negative_slope=negative_slope),
        out_shape=jax.ShapeDtypeStruct((rows, n_dim), out_dtype),
        grid_spec=pltpu.PrefetchScalarGridSpec(
            num_scalar_prefetch=0,
            grid=(grid_m,),
            in_specs=[
                pl.BlockSpec((tm, k_dim), lambda i: (i, 0)),
                # NOTE: band/bias are grid-invariant; at larger W mark them
                # pipeline_mode=pl.Buffered(1) to drop the second VMEM copy.
                pl.BlockSpec((k_dim, n_dim), lambda i: (0, 0)),
                pl.BlockSpec((1, n_dim), lambda i: (0, 0)),
            ],
            out_specs=pl.BlockSpec((tm, n_dim), lambda i: (i, 0)),
        ),
        compiler_params=pltpu.CompilerParams(
            dimension_semantics=("parallel",),
            vmem_limit_bytes=_vmem_limit_bytes(),
        ),
    )(x_rows, wb, b_row)

    return out_rows.reshape(n, h, wdt, cout)


def conv_leaky_nhwc(x_nhwc, w_hwio, bias, *, negative_slope=0.2,
                    out_dtype=jnp.bfloat16, compute_dtype=jnp.bfloat16,
                    max_row_tile=128):
    """BasicBlock forward: conv stride-1 'same' + bias, then LeakyReLU(0.2). NHWC in/out."""
    n, h, wdt, cin = x_nhwc.shape
    kh, kw, cin_w, cout = w_hwio.shape
    assert kh == kw and kh % 2 == 1 and cin_w == cin

    # Lane-densify the 1x1 (fusion-block) path: fold row groups into the width
    # (exact for 1x1 convs) so the output last dim reaches >= 128 lanes.
    if kh == 1 and wdt * cout < 128:
        g = 1
        while g * wdt * cout < 128 and h % (2 * g) == 0:
            g *= 2
        if g > 1:
            y = _conv_leaky_impl(x_nhwc.reshape(n, h // g, g * wdt, cin), w_hwio, bias,
                                 negative_slope, out_dtype, compute_dtype, max_row_tile)
            return y.reshape(n, h, wdt, cout)
    return _conv_leaky_impl(x_nhwc, w_hwio, bias, negative_slope, out_dtype,
                            compute_dtype, max_row_tile)


def _reference_conv_leaky(x, w_hwio, bias, negative_slope=0.2):
    # XLA reference with the same bf16 rounding of the matmul operands as the kernel.
    xq = x.astype(jnp.bfloat16).astype(jnp.float32)
    wq = w_hwio.astype(jnp.bfloat16).astype(jnp.float32)
    r = w_hwio.shape[0] // 2
    y = jax.lax.conv_general_dilated(
        xq, wq, window_strides=(1, 1), padding=((r, r), (r, r)),
        dimension_numbers=("NHWC", "HWIO", "NHWC"))
    y = y + bias.reshape(1, 1, 1, -1)
    return jnp.where(y >= 0, y, negative_slope * y)


if __name__ == "__main__":
    key = jax.random.PRNGKey(0)
    ks = jax.random.split(key, 7)

    planes = 4
    batch, height, width = 2, 16, 16

    # --- BasicBlock(kernel_size=3): conv3x3 + bias + LeakyReLU(0.2) ---
    x = jax.random.normal(ks[0], (batch, height, width, planes), jnp.float32)
    w3 = jax.random.normal(ks[1], (3, 3, planes, 2 * planes), jnp.float32) * 0.1
    b3 = jax.random.normal(ks[2], (2 * planes,), jnp.float32) * 0.1

    ref3 = _reference_conv_leaky(x, w3, b3)

    out3_f32 = jax.block_until_ready(conv_leaky_nhwc(x, w3, b3, out_dtype=jnp.float32))
    assert out3_f32.shape == (batch, height, width, 2 * planes)
    assert jnp.allclose(out3_f32, ref3, atol=2e-3, rtol=2e-3), \
        float(jnp.max(jnp.abs(out3_f32 - ref3)))

    out3_bf16 = jax.block_until_ready(conv_leaky_nhwc(x, w3, b3))   # default bf16 store
    assert out3_bf16.dtype == jnp.bfloat16
    assert jnp.allclose(out3_bf16.astype(jnp.float32), ref3, atol=3e-2, rtol=3e-2), \
        float(jnp.max(jnp.abs(out3_bf16.astype(jnp.float32) - ref3)))

    # --- RecUnitStateFusionBlock: BasicBlock(kernel_size=1) on channel-concat states ---
    ha = jax.random.normal(ks[3], (batch, height, width, planes), jnp.float32)
    hb = jax.random.normal(ks[4], (batch, height, width, planes), jnp.float32)
    w1 = jax.random.normal(ks[5], (1, 1, 2 * planes, planes), jnp.float32) * 0.1
    b1 = jax.random.normal(ks[6], (planes,), jnp.float32) * 0.1

    hcat = jnp.concatenate([ha, hb], axis=-1)   # torch.cat(dim=1) == channel concat (NHWC)
    ref1 = _reference_conv_leaky(hcat, w1, b1)

    out1_f32 = jax.block_until_ready(conv_leaky_nhwc(hcat, w1, b1, out_dtype=jnp.float32))
    assert out1_f32.shape == (batch, height, width, planes)
    assert jnp.allclose(out1_f32, ref1, atol=2e-3, rtol=2e-3), \
        float(jnp.max(jnp.abs(out1_f32 - ref1)))

    out1_bf16 = jax.block_until_ready(conv_leaky_nhwc(hcat, w1, b1))
    assert out1_bf16.dtype == jnp.bfloat16
    assert jnp.allclose(out1_bf16.astype(jnp.float32), ref1, atol=3e-2, rtol=3e-2), \
        float(jnp.max(jnp.abs(out1_bf16.astype(jnp.float32) - ref1)))

    print("KERNEL_OK")
</pallas_src>

<mosaic_0001>
module attributes {stable_mosaic.version = 11 : i64} {
  func.func @_band_matmul_kernel(%arg0: i32, %arg1: memref<32x192xbf16, #tpu.memory_space<vmem>>, %arg2: memref<192x128xbf16, #tpu.memory_space<vmem>>, %arg3: memref<1x128xf32, #tpu.memory_space<vmem>>, %arg4: memref<32x128xf32, #tpu.memory_space<vmem>>) attributes {dimension_semantics = [#tpu.dimension_semantics<parallel>], iteration_bounds = array<i64: 1>, scalar_prefetch = 0 : i64, scratch_operands = 0 : i64, tpu.core_type = #tpu.core_type<tc>, window_params = [{transform_indices = @transform_0, window_bounds = array<i64: 32, 192>}, {pipeline_mode = #tpu.pipeline_mode<synchronous>, transform_indices = @transform_1, window_bounds = array<i64: 192, 128>}, {pipeline_mode = #tpu.pipeline_mode<synchronous>, transform_indices = @transform_2, window_bounds = array<i64: 1, 128>}, {transform_indices = @transform_3, window_bounds = array<i64: 32, 128>}]} {
    %c0 = arith.constant 0 : index
    %c0_0 = arith.constant 0 : index
    %0 = vector.load %arg1[%c0, %c0_0] : memref<32x192xbf16, #tpu.memory_space<vmem>>, vector<32x192xbf16>
    %c0_1 = arith.constant 0 : index
    %c0_2 = arith.constant 0 : index
    %1 = vector.load %arg2[%c0_1, %c0_2] : memref<192x128xbf16, #tpu.memory_space<vmem>>, vector<192x128xbf16>
    %cst = arith.constant dense<0.000000e+00> : vector<32x128xf32>
    %2 = tpu.matmul %0, %1, %cst {dimension_numbers = #tpu.dot_dimension_numbers<[1], [0], [0], [1], [0, 0, 1, 1], [], []>} : vector<32x192xbf16>, vector<192x128xbf16>, vector<32x128xf32> -> vector<32x128xf32>
    %c0_3 = arith.constant 0 : index
    %c0_4 = arith.constant 0 : index
    %3 = vector.load %arg3[%c0_3, %c0_4] : memref<1x128xf32, #tpu.memory_space<vmem>>, vector<1x128xf32>
    %4 = vector.broadcast %3 : vector<1x128xf32> to vector<32x128xf32>
    %5 = arith.addf %2, %4 : vector<32x128xf32>
    %cst_5 = arith.constant 0.000000e+00 : f32
    %6 = vector.broadcast %cst_5 : f32 to vector<32x128xf32>
    %7 = arith.cmpf oge, %5, %6 : vector<32x128xf32>
    %cst_6 = arith.constant 2.000000e-01 : f32
    %8 = vector.broadcast %cst_6 : f32 to vector<32x128xf32>
    %9 = arith.mulf %8, %5 : vector<32x128xf32>
    %10 = arith.select %7, %5, %9 : vector<32x128xi1>, vector<32x128xf32>
    %c0_7 = arith.constant 0 : index
    %c0_8 = arith.constant 0 : index
    %11 = vector.load %arg4[%c0_7, %c0_8] : memref<32x128xf32, #tpu.memory_space<vmem>>, vector<32x128xf32>
    tpu.vector_store %arg4[%c0_7, %c0_8], %10 {strides = array<i32>} : memref<32x128xf32, #tpu.memory_space<vmem>>, vector<32x128xf32>,
    return
  }
  func.func @transform_0(%arg0: i32) -> (i32, i32) {
    %c0_i32 = arith.constant 0 : i32
    %c0_i32_0 = arith.constant 0 : i32
    return %arg0, %c0_i32 : i32, i32
  }
  func.func @transform_1(%arg0: i32) -> (i32, i32) {
    %c0_i32 = arith.constant 0 : i32
    %c0_i32_0 = arith.constant 0 : i32
    %c0_i32_1 = arith.constant 0 : i32
    return %c0_i32, %c0_i32_0 : i32, i32
  }
  func.func @transform_2(%arg0: i32) -> (i32, i32) {
    %c0_i32 = arith.constant 0 : i32
    %c0_i32_0 = arith.constant 0 : i32
    %c0_i32_1 = arith.constant 0 : i32
    return %c0_i32, %c0_i32_0 : i32, i32
  }
  func.func @transform_3(%arg0: i32) -> (i32, i32) {
    %c0_i32 = arith.constant 0 : i32
    %c0_i32_0 = arith.constant 0 : i32
    return %arg0, %c0_i32 : i32, i32
  }
}

</mosaic_0001>

<llo_original>
// kernel: tpu_custom_call.1
$region0: #{tpu_custom_call.1}
  #allocation0 [shape = 'u32[]', space=smem, size = 0x4, offset = 0x4, fixed_abs, tag = 'smem constant byte address 0x4 - core index']
  #allocation1 [shape = 'u32[144,128]{1,0:T(1,128)}', space=vmem, size = 0x12000, scoped, tag = 'internal scratch']
  %s0 = inlined_call_operand.hbm [shape: bf16[32,192], index: 0, kind: input, shape index: {}]
  %s1 = inlined_call_operand.hbm [shape: bf16[192,128], index: 1, kind: input, shape index: {}]
  %s2 = inlined_call_operand.hbm [shape: f32[1,128], index: 2, kind: input, shape index: {}]
  %s3 = inlined_call_operand.hbm [shape: f32[32,128], index: 3, kind: output, shape index: {}]
  %s4 = sld [smem:[#allocation0]]
  $region34: #{tpu_custom_call.1} parent=0
    _
  %s6 = ssub.s32 1, %s4
  %s7 = scalar_select 0, %s6, %s4
  $region1: #{tpu_custom_call.1} parent=0
    #allocation2 [shape = 'u8[16384]{0}', space=vmem, size = 0x4000, scoped, tag = 'input window, operand 0, single buffered']
    #allocation3 [shape = 's32[1]{0}', space=sflag, size = 0x4, scoped, tag = 'scoped memory for tpu_custom_call.1']
    #allocation4 [shape = 's32[1]{0}', space=sflag, size = 0x4, scoped, tag = 'scoped memory for tpu_custom_call.1']
    #allocation5 [shape = 'u8[49152]{0}', space=vmem, size = 0xc000, scoped, tag = 'input window, operand 1, single buffered']
    #allocation6 [shape = 's32[1]{0}', space=sflag, size = 0x4, scoped, tag = 'scoped memory for tpu_custom_call.1']
    #allocation7 [shape = 'u8[512]{0}', space=vmem, size = 0x400, scoped, tag = 'input window, operand 2, single buffered']
    #allocation8 [shape = 'u8[16384]{0}', space=vmem, size = 0x4000, scoped, tag = 'output window, operand 0, single buffered']
    %8 = vsyncpa [#allocation3], 0
    %9 = vsyncpa [#allocation6], 0
    %10 = vsyncpa [#allocation4], 0
    // Predicated region
    $region2: #{tpu_custom_call.1} parent=1 // pred_check
      _
    $region3: #{tpu_custom_call.1} parent=1 // pred_check_branch
      %12 = sbr.rel (0) target = $region5
    $region4: #{tpu_custom_call.1} parent=1 // pred_region
      %s14 = ssub.s32 512, 512
      %15 = vsyncadd [#allocation3], %s14
      %s16 = sshll.u32 [#allocation2], 4
      %s17 = int_to_ptr.vmem [resolvable:$true] %s16
      %22 = dma.hbm_to_vmem [thread:$0]  %s0, 512, %s17, [#allocation3], 128, 128, 8
    $region5: #{tpu_custom_call.1} parent=1 // pred_fallthru
      _
    // Predicated region
    $region6: #{tpu_custom_call.1} parent=1 // pred_check
      _
    $region7: #{tpu_custom_call.1} parent=1 // pred_check_branch
      %24 = sbr.rel (0) target = $region9
    $region8: #{tpu_custom_call.1} parent=1 // pred_region
      %s26 = ssub.s32 1536, 1536
      %27 = vsyncadd [#allocation6], %s26
      %s28 = sshll.u32 [#allocation5], 4
      %s29 = int_to_ptr.vmem [resolvable:$true] %s28
      %34 = dma.hbm_to_vmem [thread:$0]  %s1, 1536, %s29, [#allocation6], 64, 64, 4
    $region9: #{tpu_custom_call.1} parent=1 // pred_fallthru
      _
    // Predicated region
    $region10: #{tpu_custom_call.1} parent=1 // pred_check
      _
    $region11: #{tpu_custom_call.1} parent=1 // pred_check_branch
      %36 = sbr.rel (0) target = $region13
    $region12: #{tpu_custom_call.1} parent=1 // pred_region
      %s38 = ssub.s32 16, 16
      %39 = vsyncadd [#allocation6], %s38
      %s41 = sshll.u32 [#allocation7], 4
      %s42 = int_to_ptr.vmem [resolvable:$true] %s41
      %44 = dma.hbm_to_vmem [thread:$0]  %s2, 16, %s42, [#allocation6]
    $region13: #{tpu_custom_call.1} parent=1 // pred_fallthru
      _
    // Predicated region
    $region14: #{tpu_custom_call.1} parent=1 // pred_check
      _
    $region15: #{tpu_custom_call.1} parent=1 // pred_check_branch
      %46 = sbr.rel (0) target = $region17
    $region16: #{tpu_custom_call.1} parent=1 // pred_region
      %47 = dma.done [#allocation3], 512
    $region17: #{tpu_custom_call.1} parent=1 // pred_fallthru
      _
    // Predicated region
    $region18: #{tpu_custom_call.1} parent=1 // pred_check
      _
    $region19: #{tpu_custom_call.1} parent=1 // pred_check_branch
      %49 = sbr.rel (0) target = $region21
    $region20: #{tpu_custom_call.1} parent=1 // pred_region
      %50 = dma.done [#allocation6], 1536
    $region21: #{tpu_custom_call.1} parent=1 // pred_fallthru
      _
    // Predicated region
    $region22: #{tpu_custom_call.1} parent=1 // pred_check
      _
    $region23: #{tpu_custom_call.1} parent=1 // pred_check_branch
      %52 = sbr.rel (0) target = $region25
    $region24: #{tpu_custom_call.1} parent=1 // pred_region
      %53 = dma.done [#allocation6], 16
    $region25: #{tpu_custom_call.1} parent=1 // pred_fallthru
      _
    %v55 = vld [vmem:[#allocation2] sm:$0xff]
    %v56 = vld [vmem:[#allocation2 + $0x8] sm:$0xff]
    %v57 = vld [vmem:[#allocation2 + $0x10] sm:$0xff]
    %v58 = vld [vmem:[#allocation2 + $0x18] sm:$0xff]
    %v59 = vld [vmem:[#allocation5] sm:$0xf]
    %v60 = vld [vmem:[#allocation5 + $0x4] sm:$0xf]
    %v61 = vld [vmem:[#allocation5 + $0x8] sm:$0xf]
    %v62 = vld [vmem:[#allocation5 + $0xc] sm:$0xf]
    %v63 = vld [vmem:[#allocation5 + $0x10] sm:$0xf]
    %v64 = vld [vmem:[#allocation5 + $0x14] sm:$0xf]
    %v65 = vld [vmem:[#allocation5 + $0x18] sm:$0xf]
    %v66 = vld [vmem:[#allocation5 + $0x1c] sm:$0xf]
    %v67 = vld [vmem:[#allocation5 + $0x20] sm:$0xf]
    %v68 = vld [vmem:[#allocation5 + $0x24] sm:$0xf]
    %v69 = vld [vmem:[#allocation5 + $0x28] sm:$0xf]
    %v70 = vld [vmem:[#allocation5 + $0x2c] sm:$0xf]
    %v71 = vld [vmem:[#allocation5 + $0x30] sm:$0xf]
    %v72 = vld [vmem:[#allocation5 + $0x34] sm:$0xf]
    %v73 = vld [vmem:[#allocation5 + $0x38] sm:$0xf]
    %v74 = vld [vmem:[#allocation5 + $0x3c] sm:$0xf]
    %v75 = vld [vmem:[#allocation5 + $0x40] sm:$0xf]
    %v76 = vld [vmem:[#allocation5 + $0x44] sm:$0xf]
    %v77 = vld [vmem:[#allocation5 + $0x48] sm:$0xf]
    %v78 = vld [vmem:[#allocation5 + $0x4c] sm:$0xf]
    %v79 = vld [vmem:[#allocation5 + $0x50] sm:$0xf]
    %v80 = vld [vmem:[#allocation5 + $0x54] sm:$0xf]
    %v81 = vld [vmem:[#allocation5 + $0x58] sm:$0xf]
    %v82 = vld [vmem:[#allocation5 + $0x5c] sm:$0xf]
    %v83 = vld [vmem:[#allocation7] sm:$0x1]
    %v85 = vlaneseq
    %v86 = vshrl.u32 %v85, 7
    %v87 = vsub.s32 0, %v86
    %v88 = vrot.slane %v83, %v87
    %v94 = vunpack.c.l.b16 %v55
    %v95 = vunpack.c.h.b16 %v55
    %v96 = vunpack.c.l.b16 %v56
    %v97 = vunpack.c.h.b16 %v56
    %v98 = vunpack.c.l.b16 %v57
    %v99 = vunpack.c.h.b16 %v57
    %v100 = vunpack.c.l.b16 %v58
    %v101 = vunpack.c.h.b16 %v58
    %v102 = vpack.c.b16 %v96, %v94
    %v103 = vpack.c.b16 %v97, %v95
    %v104 = vpack.c.b16 %v100, %v98
    %v105 = vpack.c.b16 %v101, %v99
    %v132 = vunpack.c.l.b16 %v59
    %v133 = vunpack.c.l.b16 %v60
    %v134 = vunpack.c.l.b16 %v61
    %v135 = vunpack.c.l.b16 %v62
    %v136 = vunpack.c.l.b16 %v63
    %v137 = vunpack.c.l.b16 %v64
    %v138 = vunpack.c.l.b16 %v65
    %v139 = vunpack.c.l.b16 %v66
    %v140 = vunpack.c.l.b16 %v67
    %v141 = vunpack.c.l.b16 %v68
    %v142 = vunpack.c.l.b16 %v69
    %v143 = vunpack.c.l.b16 %v70
    %v144 = vunpack.c.l.b16 %v71
    %v145 = vunpack.c.l.b16 %v72
    %v146 = vunpack.c.l.b16 %v73
    %v147 = vunpack.c.l.b16 %v74
    %v148 = vunpack.c.l.b16 %v75
    %v149 = vunpack.c.l.b16 %v76
    %v150 = vunpack.c.l.b16 %v77
    %v151 = vunpack.c.l.b16 %v78
    %v152 = vunpack.c.l.b16 %v79
    %v153 = vunpack.c.l.b16 %v80
    %v154 = vunpack.c.l.b16 %v81
    %v155 = vunpack.c.l.b16 %v82
    %v156 = vpack.c.b16 %v133, %v132
    %v157 = vpack.c.b16 %v135, %v134
    %v158 = vpack.c.b16 %v137, %v136
    %v159 = vpack.c.b16 %v139, %v138
    %v160 = vpack.c.b16 %v141, %v140
    %v161 = vpack.c.b16 %v143, %v142
    %v162 = vpack.c.b16 %v145, %v144
    %v163 = vpack.c.b16 %v147, %v146
    %v164 = vpack.c.b16 %v149, %v148
    %v165 = vpack.c.b16 %v151, %v150
    %v166 = vpack.c.b16 %v153, %v152
    %v167 = vpack.c.b16 %v155, %v154
    %vm180 = vcmask 523264
    %v182 = vsel %vm180, %v103, 0
    %v185 = vsel %vm180, %v105, 0
    %187 = vmatprep.subr.bf16.mxu0 0
    %188 = vmatpush1.bf16.msra.mxu0 %v156
    %189 = vmatprep.subr.bf16.mxu0 0
    %190 = vmatpush1.bf16.msra.mxu0 %v157
    %191 = vmatprep.subr.bf16.mxu0 0
    %192 = vmatpush1.bf16.msra.mxu0 %v158
    %193 = vmatprep.subr.bf16.mxu0 0
    %194 = vmatpush1.bf16.msra.mxu0 %v159
    %195 = vmatprep.subr.bf16.mxu0 0
    %196 = vmatpush1.bf16.msra.mxu0 %v160
    %197 = vmatprep.subr.bf16.mxu0 0
    %198 = vmatpush1.bf16.msra.mxu0 %v161
    %199 = vmatprep.subr.bf16.mxu0 0
    %200 = vmatpush1.bf16.msra.mxu0 %v162
    %201 = vmatprep.subr.bf16.mxu0 0
    %202 = vmatpush1.bf16.msra.mxu0 %v163
    %203 = vmatprep.subr.bf16.mxu0 0
    %204 = vmatpush1.bf16.msra.mxu0 %v164
    %205 = vmatprep.subr.bf16.mxu0 0
    %206 = vmatpush1.bf16.msra.mxu0 %v165
    %207 = vmatprep.subr.bf16.mxu0 0
    %208 = vmatpush1.bf16.msra.mxu0 %v166
    %209 = vmatprep.subr.bf16.mxu0 0
    %210 = vmatpush1.bf16.msra.mxu0 %v167
    %211 = vmatprep.subr.bf16.mxu0 0
    %212 = vmatpush1.bf16.msra.mxu0 0
    %213 = vmatprep.subr.bf16.mxu0 0
    %214 = vmatpush1.bf16.msra.mxu0 0
    %215 = vmatprep.subr.bf16.mxu0 0
    %216 = vmatpush1.bf16.msra.mxu0 0
    %217 = vmatprep.subr.bf16.mxu0 0
    %218 = vmatpush1.bf16.msra.mxu0 0
    %219 = vmatprep.mubr.bf16.mxu0 %v182
    %220 = vmatmul.mubr.bf16.gmra.mrb[0].mxu0 %v102
    %v221 = vpop.f32.mrb[0].mxu0
    %v222 = vadd.f32 %v88, %v221
    %v223 = vpop.f32.mrb[0].mxu0
    %v224 = vpop.f32.mrb[0].mxu0
    %v225 = vadd.f32 %v88, %v224
    %v226 = vpop.f32.mrb[0].mxu0
    %227 = vmatprep.mubr.bf16.mxu0 %v185
    %228 = vmatmul.mubr.bf16.gmra.mrb[0].mxu0 %v104
    %v229 = vpop.f32.mrb[0].mxu0
    %v230 = vadd.f32 %v88, %v229
    %v231 = vpop.f32.mrb[0].mxu0
    %v232 = vpop.f32.mrb[0].mxu0
    %v233 = vadd.f32 %v88, %v232
    %v234 = vpop.f32.mrb[0].mxu0
    %235 = vdwg.mxu0
    %vm236 = vcmp.ge.f32.partialorder %v222, 0.0
    %vm237 = vcmp.ge.f32.partialorder %v225, 0.0
    %vm238 = vcmp.ge.f32.partialorder %v230, 0.0
    %vm239 = vcmp.ge.f32.partialorder %v233, 0.0
    %v240 = vmul.f32 %v222, 0.2
    %v241 = vmul.f32 %v225, 0.2
    %v242 = vmul.f32 %v230, 0.2
    %v243 = vmul.f32 %v233, 0.2
    %v244 = vsel %vm236, %v222, %v240
    %v245 = vsel %vm237, %v225, %v241
    %v246 = vsel %vm238, %v230, %v242
    %v247 = vsel %vm239, %v233, %v243
    %248 = vst [vmem:[#allocation8] sm:$0xff] %v244
    %249 = vst [vmem:[#allocation8 + $0x8] sm:$0xff] %v245
    %250 = vst [vmem:[#allocation8 + $0x10] sm:$0xff] %v246
    %251 = vst [vmem:[#allocation8 + $0x18] sm:$0xff] %v247
    // Predicated region
    $region26: #{tpu_custom_call.1} parent=1 // pred_check
      _
    $region27: #{tpu_custom_call.1} parent=1 // pred_check_branch
      %253 = sbr.rel (0) target = $region29
    $region28: #{tpu_custom_call.1} parent=1 // pred_region
      %s255 = ssub.s32 512, 512
      %256 = vsyncadd [#allocation4], %s255
      %s257 = sshll.u32 [#allocation8], 4
      %s258 = int_to_ptr.vmem [resolvable:$true] %s257
      %263 = dma.vmem_to_hbm [thread:$0]  %s258, 512, %s3, [#allocation4], 128, 128, 8
    $region29: #{tpu_custom_call.1} parent=1 // pred_fallthru
      _
    // Predicated region
    $region30: #{tpu_custom_call.1} parent=1 // pred_check
      _
    $region31: #{tpu_custom_call.1} parent=1 // pred_check_branch
      %265 = sbr.rel (0) target = $region33
    $region32: #{tpu_custom_call.1} parent=1 // pred_region
      %266 = dma.done [#allocation4], 512
    $region33: #{tpu_custom_call.1} parent=1 // pred_fallthru
      _
    %267 = vsyncpa [#allocation3], 1
    %268 = vsyncpa [#allocation6], 1
    %269 = vsyncpa [#allocation4], 1

</llo_original>
